<compile_context>
chip_gen: v6e
topology: v6e:2x2x1
jax: 0.10.0
libtpu: 0.0.40
codegen_flags: <defaults>
</compile_context>

<pallas_src>
import jax
import jax.numpy as jnp
from jax.experimental import pallas as pl
from jax.experimental.pallas import tpu as pltpu

LN_EPS = 1e-5


def _round_up(v, m):
    return (v + m - 1) // m * m


def _choose_tile_rows(hout, ws, batch):
    """Output rows (along Hout) per grid step.

    ws is a multiple of 8, so any divisor of hout gives a layout-legal (th*ws, Coutp) block.
    Pick the largest divisor under the cap (big blocks amortize the ~0.35us/step overhead),
    prefer th*ws % 16 == 0 (bf16 LHS sublane packing), and only insist on >= 2 grid steps
    when B == 1 (otherwise the batch axis already feeds the pipeline / megacore).
    """
    cap = 4096
    divisors = [d for d in range(1, hout + 1) if hout % d == 0]
    fit = [d for d in divisors if d * ws <= cap] or [1]
    fit16 = [d for d in fit if (d * ws) % 16 == 0]
    pool = fit16 or fit
    th = max(pool)
    if batch == 1 and th == hout:
        smaller = [d for d in pool if d < hout] or [d for d in fit if d < hout]
        if smaller:
            th = max(smaller)
    return th


def _make_kernel(th, ws, c_in, cout_pad, cout_real):
    tnp = th * ws               # tokens per grid step (includes padded junk columns)
    k1 = 3 * c_in
    inv_cout = 1.0 / float(cout_real)
    need_mask = cout_pad != cout_real

    def kernel(x_ref, w0_ref, w1_ref, b_ref, g_ref, beta_ref, o_ref):
        # x_ref : (1, (Hout+1)*Ws, 6C) bf16  -- per-batch channel-packed slab, resident
        # w0_ref: (6C, Coutp) bf16 (taps ky in {0,1}) ; w1_ref: (3C, Coutp) bf16 (taps ky = 2)
        # b/g/beta: (1, Coutp) f32 ; o_ref: (1, TNp, Coutp)
        t = pl.program_id(1)
        r0 = pl.multiple_of(t * tnp, 8)          # Ws % 8 == 0 -> sublane-aligned starts
        r1 = pl.multiple_of(t * tnp + ws, 8)

        l0 = x_ref[0, pl.ds(r0, tnp), :]         # (TNp, 6C): taps (ky,kx) ky in {0,1}
        l1 = x_ref[0, pl.ds(r1, tnp), :k1]       # (TNp, 3C): taps (2,0),(2,1),(2,2)

        acc = jnp.dot(l0, w0_ref[...], preferred_element_type=jnp.float32)   # MXU, K = 6C
        acc = acc + jnp.dot(l1, w1_ref[...], preferred_element_type=jnp.float32)  # K = 3C
        y = acc + b_ref[...]                     # conv bias, f32

        # LayerNorm over the real Cout channels (centered two-pass variance).
        if need_mask:
            lane = jax.lax.broadcasted_iota(jnp.int32, (1, cout_pad), 1)
            mask = (lane < cout_real).astype(jnp.float32)
            mean = jnp.sum(y * mask, axis=-1, keepdims=True) * inv_cout
            yc = (y - mean) * mask
        else:
            mean = jnp.sum(y, axis=-1, keepdims=True) * inv_cout
            yc = y - mean
        var = jnp.sum(yc * yc, axis=-1, keepdims=True) * inv_cout
        rstd = jax.lax.rsqrt(var + LN_EPS)       # EUP
        o_ref[0] = (yc * rstd * g_ref[...] + beta_ref[...]).astype(o_ref.dtype)

    return kernel


def merge_block(x, conv_w, conv_b, ln_gamma, ln_beta, *, out_dtype=jnp.float32):
    """x: (B, C, H, W) float32 NCHW.  Returns (B, Cout, H//2, W//2) NCHW (out_dtype)."""
    B, C, H, W = x.shape
    Cout = conv_w.shape[0]
    assert conv_w.shape == (Cout, C, 3, 3)
    assert H % 2 == 0 and W % 2 == 0
    Hout, Wout = H // 2, W // 2
    Ws = _round_up(Wout + 1, 8)                       # padded token-grid width (>= Wout+1)
    Coutp = _round_up(max(Cout, 128), 128)            # lane-dense output channels

    th = _choose_tile_rows(Hout, Ws, B)
    n_tiles = Hout // th
    TNp = th * Ws

    # ---- layout glue (~1x-sized, single pad + one fused transform; NOT im2col):
    # channel-pack the four stride-2 phases plus the two column-shifted (kx=2) planes so every
    # tap of output token (ho, wo) sits in the channel dim at slab rows ho and ho+1.
    xpad = jnp.pad(x, ((0, 0), (0, 0), (1, 1), (1, 1))).astype(jnp.bfloat16)   # (B,C,H+2,W+2)
    xr = xpad.reshape(B, C, Hout + 1, 2, Wout + 1, 2)
    base = jnp.transpose(xr, (0, 2, 4, 3, 5, 1))        # (B, r, s, ph, pw, C)
    shift = jnp.pad(base[:, :, 1:, :, 0, :],            # kx=2 taps: pw=0 plane shifted by one col
                    ((0, 0), (0, 0), (0, 1), (0, 0), (0, 0)))
    comb = jnp.concatenate([base, shift[:, :, :, :, None, :]], axis=4)   # (B,r,s,ph,3,C)
    slab = comb.reshape(B, Hout + 1, Wout + 1, 6 * C)
    slab = jnp.pad(slab, ((0, 0), (0, 0), (0, Ws - (Wout + 1)), (0, 0)))
    slab = slab.reshape(B, (Hout + 1) * Ws, 6 * C)       # pre-flattened, 8-aligned token rows

    # conv weights packed to match the slab channel blocks; Cout zero-padded to Coutp.
    w0 = jnp.transpose(conv_w[:, :, 0:2, :], (2, 3, 1, 0)).reshape(6 * C, Cout)  # ky in {0,1}
    w1 = jnp.transpose(conv_w[:, :, 2, :], (2, 1, 0)).reshape(3 * C, Cout)       # ky = 2
    pad_c = Coutp - Cout
    w0 = jnp.pad(w0, ((0, 0), (0, pad_c))).astype(jnp.bfloat16)
    w1 = jnp.pad(w1, ((0, 0), (0, pad_c))).astype(jnp.bfloat16)
    b_row = jnp.pad(conv_b.astype(jnp.float32), (0, pad_c)).reshape(1, Coutp)
    g_row = jnp.pad(ln_gamma.astype(jnp.float32), (0, pad_c)).reshape(1, Coutp)
    beta_row = jnp.pad(ln_beta.astype(jnp.float32), (0, pad_c)).reshape(1, Coutp)

    kernel = _make_kernel(th, Ws, C, Coutp, Cout)

    # VMEM limit from the actual footprint (double-buffered), capped v7x-safe at 32 MiB.
    out_elt = jnp.dtype(out_dtype).itemsize
    slab_blk = (Hout + 1) * Ws * 6 * C * 2
    w_bytes = (6 * C + 3 * C) * Coutp * 2
    out_blk = TNp * Coutp * out_elt
    prm = 3 * Coutp * 4
    footprint = 2 * (slab_blk + w_bytes + out_blk + prm)
    vmem_limit = int(max(16 << 20, min(32 << 20, 2 * footprint + (4 << 20))))
    if vmem_limit < footprint + (4 << 20):
        vmem_limit = int(footprint + (4 << 20))

    cost = pl.CostEstimate(
        flops=2 * B * Hout * Ws * 9 * C * Coutp,
        transcendentals=B * Hout * Ws,
        bytes_accessed=int(slab.size * 2 + (w0.size + w1.size) * 2
                           + 3 * Coutp * 4 + B * Hout * Ws * Coutp * out_elt),
    )

    out_full = pl.pallas_call(
        kernel,
        out_shape=jax.ShapeDtypeStruct((B, Hout * Ws, Coutp), out_dtype),
        grid_spec=pltpu.PrefetchScalarGridSpec(
            num_scalar_prefetch=0,
            grid=(B, n_tiles),
            in_specs=[
                # Per-batch slab: constant in t -> fetched once per batch, resident.
                pl.BlockSpec((1, (Hout + 1) * Ws, 6 * C), lambda b, t: (b, 0, 0)),
                # Weights / params: constant index_map -> resident across the whole grid.
                pl.BlockSpec((6 * C, Coutp), lambda b, t: (0, 0)),
                pl.BlockSpec((3 * C, Coutp), lambda b, t: (0, 0)),
                pl.BlockSpec((1, Coutp), lambda b, t: (0, 0)),
                pl.BlockSpec((1, Coutp), lambda b, t: (0, 0)),
                pl.BlockSpec((1, Coutp), lambda b, t: (0, 0)),
            ],
            out_specs=pl.BlockSpec((1, TNp, Coutp), lambda b, t: (b, t, 0)),
        ),
        compiler_params=pltpu.CompilerParams(
            dimension_semantics=("parallel", "parallel"),
            vmem_limit_bytes=vmem_limit),
        cost_estimate=cost,
    )(slab, w0, w1, b_row, g_row, beta_row)

    # Back to the module's NCHW layout; the junk-column / pad-channel slice fuses into this
    # (required) transpose.  Skip the transpose if the consumer accepts (B, N, Cout) directly.
    out = out_full.reshape(B, Hout, Ws, Coutp)[:, :, :Wout, :Cout]
    return jnp.transpose(out, (0, 3, 1, 2))


def _reference(x, conv_w, conv_b, ln_gamma, ln_beta, *, quantize_bf16=False):
    """Pure-JAX reference reproducing the PyTorch module (optionally with bf16-quantized
    matmul operands to mirror the kernel's MXU operand precision)."""
    if quantize_bf16:
        x = x.astype(jnp.bfloat16).astype(jnp.float32)
        conv_w = conv_w.astype(jnp.bfloat16).astype(jnp.float32)
    y = jax.lax.conv_general_dilated(
        x, conv_w, window_strides=(2, 2), padding=((1, 1), (1, 1)),
        dimension_numbers=("NCHW", "OIHW", "NCHW"))
    y = y + conv_b.reshape(1, -1, 1, 1)
    B, Cout, Ho, Wo = y.shape
    t = y.reshape(B, Cout, Ho * Wo).transpose(0, 2, 1)        # (B, N, Cout)
    mean = jnp.mean(t, axis=-1, keepdims=True)
    var = jnp.mean((t - mean) ** 2, axis=-1, keepdims=True)
    t = (t - mean) / jnp.sqrt(var + LN_EPS) * ln_gamma + ln_beta
    return t.transpose(0, 2, 1).reshape(B, Cout, Ho, Wo)


if __name__ == "__main__":
    key = jax.random.PRNGKey(0)
    k_x, k_w, k_b, k_g, k_be = jax.random.split(key, 5)

    B, dim, H, W = 2, 4, 16, 16
    dim_out = 8

    x = jax.random.normal(k_x, (B, dim, H, W), dtype=jnp.float32)
    conv_w = jax.random.normal(k_w, (dim_out, dim, 3, 3), dtype=jnp.float32) * 0.1
    conv_b = jax.random.normal(k_b, (dim_out,), dtype=jnp.float32) * 0.1
    ln_gamma = 1.0 + 0.1 * jax.random.normal(k_g, (dim_out,), dtype=jnp.float32)
    ln_beta = 0.1 * jax.random.normal(k_be, (dim_out,), dtype=jnp.float32)

    merge_fn = jax.jit(merge_block)
    out = jax.block_until_ready(merge_fn(x, conv_w, conv_b, ln_gamma, ln_beta))
    assert out.shape == (B, dim_out, H // 2, W // 2)

    # Tight check vs a reference using the same bf16 operand quantization as the MXU path.
    ref_q = _reference(x, conv_w, conv_b, ln_gamma, ln_beta, quantize_bf16=True)
    assert jnp.allclose(out, ref_q, atol=1e-3, rtol=1e-3), "mismatch vs bf16-operand reference"

    # Loose check vs the pure-f32 PyTorch-equivalent reference (tolerance covers bf16 operands).
    ref = _reference(x, conv_w, conv_b, ln_gamma, ln_beta)
    assert jnp.allclose(out, ref, atol=5e-2, rtol=5e-2), "mismatch vs f32 reference"

    print("KERNEL_OK")
</pallas_src>

<mosaic_0001>
module attributes {stable_mosaic.version = 11 : i64} {
  func.func @kernel(%arg0: i32, %arg1: i32, %arg2: memref<1x144x24xbf16, #tpu.memory_space<vmem>>, %arg3: memref<24x128xbf16, #tpu.memory_space<vmem>>, %arg4: memref<12x128xbf16, #tpu.memory_space<vmem>>, %arg5: memref<1x128xf32, #tpu.memory_space<vmem>>, %arg6: memref<1x128xf32, #tpu.memory_space<vmem>>, %arg7: memref<1x128xf32, #tpu.memory_space<vmem>>, %arg8: memref<1x128x128xf32, #tpu.memory_space<vmem>>) attributes {dimension_semantics = [#tpu.dimension_semantics<parallel>, #tpu.dimension_semantics<parallel>], iteration_bounds = array<i64: 2, 1>, scalar_prefetch = 0 : i64, scratch_operands = 0 : i64, tpu.core_type = #tpu.core_type<tc>, window_params = [{transform_indices = @transform_0, window_bounds = array<i64: 1, 144, 24>}, {pipeline_mode = #tpu.pipeline_mode<synchronous>, transform_indices = @transform_1, window_bounds = array<i64: 24, 128>}, {pipeline_mode = #tpu.pipeline_mode<synchronous>, transform_indices = @transform_2, window_bounds = array<i64: 12, 128>}, {pipeline_mode = #tpu.pipeline_mode<synchronous>, transform_indices = @transform_3, window_bounds = array<i64: 1, 128>}, {pipeline_mode = #tpu.pipeline_mode<synchronous>, transform_indices = @transform_4, window_bounds = array<i64: 1, 128>}, {pipeline_mode = #tpu.pipeline_mode<synchronous>, transform_indices = @transform_5, window_bounds = array<i64: 1, 128>}, {transform_indices = @transform_6, window_bounds = array<i64: 1, 128, 128>}]} {
    %c128_i32 = arith.constant 128 : i32
    %0 = arith.muli %arg1, %c128_i32 : i32
    %1 = tpu.assume_multiple %0, 8 : i32
    %c128_i32_0 = arith.constant 128 : i32
    %2 = arith.muli %arg1, %c128_i32_0 : i32
    %c16_i32 = arith.constant 16 : i32
    %3 = arith.addi %2, %c16_i32 : i32
    %4 = tpu.assume_multiple %3, 8 : i32
    %c0 = arith.constant 0 : index
    %5 = arith.index_cast %1 : i32 to index
    %c0_1 = arith.constant 0 : index
    %6 = vector.load %arg2[%c0, %5, %c0_1] : memref<1x144x24xbf16, #tpu.memory_space<vmem>>, vector<1x128x24xbf16>
    %7 = vector.shape_cast %6 : vector<1x128x24xbf16> to vector<128x24xbf16>
    %c0_2 = arith.constant 0 : index
    %8 = arith.index_cast %4 : i32 to index
    %c0_3 = arith.constant 0 : index
    %9 = vector.load %arg2[%c0_2, %8, %c0_3] : memref<1x144x24xbf16, #tpu.memory_space<vmem>>, vector<1x128x12xbf16>
    %10 = vector.shape_cast %9 : vector<1x128x12xbf16> to vector<128x12xbf16>
    %c0_4 = arith.constant 0 : index
    %c0_5 = arith.constant 0 : index
    %11 = vector.load %arg3[%c0_4, %c0_5] : memref<24x128xbf16, #tpu.memory_space<vmem>>, vector<24x128xbf16>
    %cst = arith.constant dense<0.000000e+00> : vector<128x128xf32>
    %12 = tpu.matmul %7, %11, %cst {dimension_numbers = #tpu.dot_dimension_numbers<[1], [0], [0], [1], [0, 0, 1, 1], [], []>} : vector<128x24xbf16>, vector<24x128xbf16>, vector<128x128xf32> -> vector<128x128xf32>
    %c0_6 = arith.constant 0 : index
    %c0_7 = arith.constant 0 : index
    %13 = vector.load %arg4[%c0_6, %c0_7] : memref<12x128xbf16, #tpu.memory_space<vmem>>, vector<12x128xbf16>
    %cst_8 = arith.constant dense<0.000000e+00> : vector<128x128xf32>
    %14 = tpu.matmul %10, %13, %cst_8 {dimension_numbers = #tpu.dot_dimension_numbers<[1], [0], [0], [1], [0, 0, 1, 1], [], []>} : vector<128x12xbf16>, vector<12x128xbf16>, vector<128x128xf32> -> vector<128x128xf32>
    %15 = arith.addf %12, %14 : vector<128x128xf32>
    %c0_9 = arith.constant 0 : index
    %c0_10 = arith.constant 0 : index
    %16 = vector.load %arg5[%c0_9, %c0_10] : memref<1x128xf32, #tpu.memory_space<vmem>>, vector<1x128xf32>
    %17 = vector.broadcast %16 : vector<1x128xf32> to vector<128x128xf32>
    %18 = arith.addf %15, %17 : vector<128x128xf32>
    %19 = tpu.iota {dimensions = array<i32: 1>} : vector<1x128xi32>
    %c8_i32 = arith.constant 8 : i32
    %20 = vector.broadcast %c8_i32 : i32 to vector<1x128xi32>
    %21 = arith.cmpi slt, %19, %20 : vector<1x128xi32>
    %22 = arith.extui %21 : vector<1x128xi1> to vector<1x128xi32>
    %23 = arith.sitofp %22 : vector<1x128xi32> to vector<1x128xf32>
    %24 = vector.broadcast %23 : vector<1x128xf32> to vector<128x128xf32>
    %25 = arith.mulf %18, %24 : vector<128x128xf32>
    %cst_11 = arith.constant dense<0.000000e+00> : vector<128xf32>
    %26 = vector.multi_reduction <add>, %25, %cst_11 [1] : vector<128x128xf32> to vector<128xf32>
    %27 = vector.shape_cast %26 : vector<128xf32> to vector<128x1xf32>
    %cst_12 = arith.constant 1.250000e-01 : f32
    %28 = vector.broadcast %cst_12 : f32 to vector<128x1xf32>
    %29 = arith.mulf %27, %28 : vector<128x1xf32>
    %30 = vector.broadcast %29 : vector<128x1xf32> to vector<128x128xf32>
    %31 = arith.subf %18, %30 : vector<128x128xf32>
    %32 = vector.broadcast %23 : vector<1x128xf32> to vector<128x128xf32>
    %33 = arith.mulf %31, %32 : vector<128x128xf32>
    %34 = arith.mulf %33, %33 : vector<128x128xf32>
    %cst_13 = arith.constant dense<0.000000e+00> : vector<128xf32>
    %35 = vector.multi_reduction <add>, %34, %cst_13 [1] : vector<128x128xf32> to vector<128xf32>
    %36 = vector.shape_cast %35 : vector<128xf32> to vector<128x1xf32>
    %cst_14 = arith.constant 1.250000e-01 : f32
    %37 = vector.broadcast %cst_14 : f32 to vector<128x1xf32>
    %38 = arith.mulf %36, %37 : vector<128x1xf32>
    %cst_15 = arith.constant 9.99999974E-6 : f32
    %39 = vector.broadcast %cst_15 : f32 to vector<128x1xf32>
    %40 = arith.addf %38, %39 : vector<128x1xf32>
    %41 = math.rsqrt %40 : vector<128x1xf32>
    %42 = vector.broadcast %41 : vector<128x1xf32> to vector<128x128xf32>
    %43 = arith.mulf %33, %42 : vector<128x128xf32>
    %c0_16 = arith.constant 0 : index
    %c0_17 = arith.constant 0 : index
    %44 = vector.load %arg6[%c0_16, %c0_17] : memref<1x128xf32, #tpu.memory_space<vmem>>, vector<1x128xf32>
    %45 = vector.broadcast %44 : vector<1x128xf32> to vector<128x128xf32>
    %46 = arith.mulf %43, %45 : vector<128x128xf32>
    %c0_18 = arith.constant 0 : index
    %c0_19 = arith.constant 0 : index
    %47 = vector.load %arg7[%c0_18, %c0_19] : memref<1x128xf32, #tpu.memory_space<vmem>>, vector<1x128xf32>
    %48 = vector.broadcast %47 : vector<1x128xf32> to vector<128x128xf32>
    %49 = arith.addf %46, %48 : vector<128x128xf32>
    %c0_20 = arith.constant 0 : index
    %c0_21 = arith.constant 0 : index
    %c0_22 = arith.constant 0 : index
    %50 = vector.load %arg8[%c0_20, %c0_21, %c0_22] : memref<1x128x128xf32, #tpu.memory_space<vmem>>, vector<1x128x128xf32>
    %51 = vector.shape_cast %50 : vector<1x128x128xf32> to vector<128x128xf32>
    %52 = vector.shape_cast %49 : vector<128x128xf32> to vector<1x128x128xf32>
    tpu.vector_store %arg8[%c0_20, %c0_21, %c0_22], %52 {strides = array<i32>} : memref<1x128x128xf32, #tpu.memory_space<vmem>>, vector<1x128x128xf32>,
    return
  }
  func.func @transform_0(%arg0: i32, %arg1: i32) -> (i32, i32, i32) {
    %c0_i32 = arith.constant 0 : i32
    %c0_i32_0 = arith.constant 0 : i32
    %c0_i32_1 = arith.constant 0 : i32
    return %arg0, %c0_i32, %c0_i32_0 : i32, i32, i32
  }
  func.func @transform_1(%arg0: i32, %arg1: i32) -> (i32, i32) {
    %c0_i32 = arith.constant 0 : i32
    %c0_i32_0 = arith.constant 0 : i32
    %c0_i32_1 = arith.constant 0 : i32
    return %c0_i32, %c0_i32_0 : i32, i32
  }
  func.func @transform_2(%arg0: i32, %arg1: i32) -> (i32, i32) {
    %c0_i32 = arith.constant 0 : i32
    %c0_i32_0 = arith.constant 0 : i32
    %c0_i32_1 = arith.constant 0 : i32
    return %c0_i32, %c0_i32_0 : i32, i32
  }
  func.func @transform_3(%arg0: i32, %arg1: i32) -> (i32, i32) {
    %c0_i32 = arith.constant 0 : i32
    %c0_i32_0 = arith.constant 0 : i32
    %c0_i32_1 = arith.constant 0 : i32
    return %c0_i32, %c0_i32_0 : i32, i32
  }
  func.func @transform_4(%arg0: i32, %arg1: i32) -> (i32, i32) {
    %c0_i32 = arith.constant 0 : i32
    %c0_i32_0 = arith.constant 0 : i32
    %c0_i32_1 = arith.constant 0 : i32
    return %c0_i32, %c0_i32_0 : i32, i32
  }
  func.func @transform_5(%arg0: i32, %arg1: i32) -> (i32, i32) {
    %c0_i32 = arith.constant 0 : i32
    %c0_i32_0 = arith.constant 0 : i32
    %c0_i32_1 = arith.constant 0 : i32
    return %c0_i32, %c0_i32_0 : i32, i32
  }
  func.func @transform_6(%arg0: i32, %arg1: i32) -> (i32, i32, i32) {
    %c0_i32 = arith.constant 0 : i32
    %c0_i32_0 = arith.constant 0 : i32
    return %arg0, %arg1, %c0_i32 : i32, i32, i32
  }
}

</mosaic_0001>

<llo_original>
// kernel: merge_block.1
$region0: #{merge_block.1}
  #allocation0 [shape = 'u32[]', space=smem, size = 0x4, offset = 0x4, fixed_abs, tag = 'smem constant byte address 0x4 - core index']
  #allocation1 [shape = 'u32[144,128]{1,0:T(1,128)}', space=vmem, size = 0x12000, scoped, tag = 'internal scratch']
  %s0 = inlined_call_operand.vmem [shape: bf16[2,144,24], index: 0, kind: input, shape index: {}]
  %s1 = inlined_call_operand.vmem [shape: bf16[24,128], index: 1, kind: input, shape index: {}]
  %s2 = inlined_call_operand.vmem [shape: bf16[12,128], index: 2, kind: input, shape index: {}]
  %s3 = inlined_call_operand.vmem [shape: f32[1,128], index: 3, kind: input, shape index: {}]
  %s4 = inlined_call_operand.vmem [shape: f32[1,128], index: 4, kind: input, shape index: {}]
  %s5 = inlined_call_operand.vmem [shape: f32[1,128], index: 5, kind: input, shape index: {}]
  %s6 = inlined_call_operand.vmem [shape: f32[2,128,128], index: 6, kind: output, shape index: {}]
  %s7 = sld [smem:[#allocation0]]
  $region57: #{merge_block.1} parent=0
    _
  %s9 = ssub.s32 1, %s7
  %s10 = scalar_select 0, %s9, %s7
  loop: start=0, step=1, limit=4
  $region2: #{merge_block.1} parent=0 // loop_pre_header
    _
  $region3: #{merge_block.1} parent=0 // loop_header
    %s12 = sphi 0, %s16
    %p13 = scmp.ge.s32.totalorder %s12, 4
    %s19 = sphi 0, %s31
    %s20 = sphi 0, %s27
    %s21 = sphi 0, %s19
    %s22 = sphi 0, %s20
    %s23 = sphi 0, %s21
    %s24 = sphi 0, %s22
    %s34 = sphi 0, %s36
    %s37 = sphi 0, %s34
    %s38 = sphi 0, %s37
    %s54 = sphi 0, %s38
    %s58 = sphi 0, %s58
    %s60 = sphi 0, %s58
    %s61 = sphi 0, %s60
    %s75 = sphi 0, %s61
    %s79 = sphi 0, %s79
    %s81 = sphi 0, %s79
    %s82 = sphi 0, %s81
    %s96 = sphi 0, %s82
    %s100 = sphi 0, %s100
    %s102 = sphi 0, %s100
    %s103 = sphi 0, %s102
    %s117 = sphi 0, %s103
    %s121 = sphi 0, %s121
    %s123 = sphi 0, %s121
    %s124 = sphi 0, %s123
    %s138 = sphi 0, %s124
    %s142 = sphi 0, %s142
    %s144 = sphi 0, %s142
    %s145 = sphi 0, %s144
    %s159 = sphi 0, %s145
    %s167 = sphi 0, %s169
    %s170 = sphi 0, %s167
    %s171 = sphi 0, %s170
    %s187 = sphi 0, %s171
  $region4: #{merge_block.1} parent=0 // loop_header_branch
    %15 = sbr.rel (%p13) target = $region8
  $region5: #{merge_block.1} parent=0 // loop_body
    %s17 = ssub.s32 %s12, 1
    %s18 = ssub.s32 %s12, 2
    %s25 = sadd.s32 1, %s20
    %p26 = scmp.ge.s32.totalorder %s25, 1
    %s27 = scalar_select %p26, 0, %s25
    %s28 = sadd.s32 1, %s19
    %s29 = scalar_select %p26, %s28, %s19
    %p30 = scmp.ge.s32.totalorder %s29, 2
    %s31 = scalar_select %p30, 0, %s29
    %s32 = ssub.s32 %s19, %s31
    %p33 = scmp.eq.s32.totalorder %s32, 0
    %s35 = sadd.s32 %s34, 1
    %s36 = scalar_select %p33, %s34, %s35
    %p39 = pneg %p33
    %p40 = scmp.eq.s32.totalorder %s12, 1
    %p41 = por %p39, %p40
    %p42 = scmp.ne.s32.totalorder %s34, %s37
    %p43 = scmp.eq.s32.totalorder %s12, 0
    %p44 = por %p42, %p43
    %p45 = scmp.ne.s32.totalorder %s34, %s37
    %p46 = scmp.eq.s32.totalorder %s17, 1
    %p47 = por %p45, %p46
    %p48 = scmp.ne.s32.totalorder %s37, %s38
    %p49 = scmp.eq.s32.totalorder %s17, 0
    %p50 = por %p48, %p49
    %p51 = scmp.ne.s32.totalorder %s37, %s38
    %p52 = scmp.eq.s32.totalorder %s18, 1
    %p53 = por %p51, %p52
    %p55 = scmp.ne.s32.totalorder %s38, %s54
    %p56 = scmp.eq.s32.totalorder %s18, 0
    %p57 = por %p55, %p56
    %s59 = sadd.s32 %s58, 1
    %p62 = scmp.eq.s32.totalorder %s12, 1
    %p63 = scmp.ne.s32.totalorder %s58, %s60
    %p64 = scmp.eq.s32.totalorder %s12, 0
    %p65 = por %p63, %p64
    %p66 = scmp.ne.s32.totalorder %s58, %s60
    %p67 = scmp.eq.s32.totalorder %s17, 1
    %p68 = por %p66, %p67
    %p69 = scmp.ne.s32.totalorder %s60, %s61
    %p70 = scmp.eq.s32.totalorder %s17, 0
    %p71 = por %p69, %p70
    %p72 = scmp.ne.s32.totalorder %s60, %s61
    %p73 = scmp.eq.s32.totalorder %s18, 1
    %p74 = por %p72, %p73
    %p76 = scmp.ne.s32.totalorder %s61, %s75
    %p77 = scmp.eq.s32.totalorder %s18, 0
    %p78 = por %p76, %p77
    %s80 = sadd.s32 %s79, 1
    %p83 = scmp.eq.s32.totalorder %s12, 1
    %p84 = scmp.ne.s32.totalorder %s79, %s81
    %p85 = scmp.eq.s32.totalorder %s12, 0
    %p86 = por %p84, %p85
    %p87 = scmp.ne.s32.totalorder %s79, %s81
    %p88 = scmp.eq.s32.totalorder %s17, 1
    %p89 = por %p87, %p88
    %p90 = scmp.ne.s32.totalorder %s81, %s82
    %p91 = scmp.eq.s32.totalorder %s17, 0
    %p92 = por %p90, %p91
    %p93 = scmp.ne.s32.totalorder %s81, %s82
    %p94 = scmp.eq.s32.totalorder %s18, 1
    %p95 = por %p93, %p94
    %p97 = scmp.ne.s32.totalorder %s82, %s96
    %p98 = scmp.eq.s32.totalorder %s18, 0
    %p99 = por %p97, %p98
    %s101 = sadd.s32 %s100, 1
    %p104 = scmp.eq.s32.totalorder %s12, 1
    %p105 = scmp.ne.s32.totalorder %s100, %s102
    %p106 = scmp.eq.s32.totalorder %s12, 0
    %p107 = por %p105, %p106
    %p108 = scmp.ne.s32.totalorder %s100, %s102
    %p109 = scmp.eq.s32.totalorder %s17, 1
    %p110 = por %p108, %p109
    %p111 = scmp.ne.s32.totalorder %s102, %s103
    %p112 = scmp.eq.s32.totalorder %s17, 0
    %p113 = por %p111, %p112
    %p114 = scmp.ne.s32.totalorder %s102, %s103
    %p115 = scmp.eq.s32.totalorder %s18, 1
    %p116 = por %p114, %p115
    %p118 = scmp.ne.s32.totalorder %s103, %s117
    %p119 = scmp.eq.s32.totalorder %s18, 0
    %p120 = por %p118, %p119
    %s122 = sadd.s32 %s121, 1
    %p125 = scmp.eq.s32.totalorder %s12, 1
    %p126 = scmp.ne.s32.totalorder %s121, %s123
    %p127 = scmp.eq.s32.totalorder %s12, 0
    %p128 = por %p126, %p127
    %p129 = scmp.ne.s32.totalorder %s121, %s123
    %p130 = scmp.eq.s32.totalorder %s17, 1
    %p131 = por %p129, %p130
    %p132 = scmp.ne.s32.totalorder %s123, %s124
    %p133 = scmp.eq.s32.totalorder %s17, 0
    %p134 = por %p132, %p133
    %p135 = scmp.ne.s32.totalorder %s123, %s124
    %p136 = scmp.eq.s32.totalorder %s18, 1
    %p137 = por %p135, %p136
    %p139 = scmp.ne.s32.totalorder %s124, %s138
    %p140 = scmp.eq.s32.totalorder %s18, 0
    %p141 = por %p139, %p140
    %s143 = sadd.s32 %s142, 1
    %p146 = scmp.eq.s32.totalorder %s12, 1
    %p147 = scmp.ne.s32.totalorder %s142, %s144
    %p148 = scmp.eq.s32.totalorder %s12, 0
    %p149 = por %p147, %p148
    %p150 = scmp.ne.s32.totalorder %s142, %s144
    %p151 = scmp.eq.s32.totalorder %s17, 1
    %p152 = por %p150, %p151
    %p153 = scmp.ne.s32.totalorder %s144, %s145
    %p154 = scmp.eq.s32.totalorder %s17, 0
    %p155 = por %p153, %p154
    %p156 = scmp.ne.s32.totalorder %s144, %s145
    %p157 = scmp.eq.s32.totalorder %s18, 1
    %p158 = por %p156, %p157
    %p160 = scmp.ne.s32.totalorder %s145, %s159
    %p161 = scmp.eq.s32.totalorder %s18, 0
    %p162 = por %p160, %p161
    %s163 = ssub.s32 %s19, %s31
    %s164 = ssub.s32 %s20, %s27
    %s165 = sor.u32 %s163, %s164
    %p166 = scmp.eq.s32.totalorder %s165, 0
    %s168 = sadd.s32 %s167, 1
    %s169 = scalar_select %p166, %s167, %s168
    %p172 = pneg %p166
    %p173 = scmp.eq.s32.totalorder %s12, 1
    %p174 = por %p172, %p173
    %p175 = scmp.ne.s32.totalorder %s167, %s170
    %p176 = scmp.eq.s32.totalorder %s12, 0
    %p177 = por %p175, %p176
    %p178 = scmp.ne.s32.totalorder %s167, %s170
    %p179 = scmp.eq.s32.totalorder %s17, 1
    %p180 = por %p178, %p179
    %p181 = scmp.ne.s32.totalorder %s170, %s171
    %p182 = scmp.eq.s32.totalorder %s17, 0
    %p183 = por %p181, %p182
    %p184 = scmp.ne.s32.totalorder %s170, %s171
    %p185 = scmp.eq.s32.totalorder %s18, 1
    %p186 = por %p184, %p185
    %p188 = scmp.ne.s32.totalorder %s171, %s187
    %p189 = scmp.eq.s32.totalorder %s18, 0
    %p190 = por %p188, %p189
    %p191 = scmp.le.s32.totalorder 1, %s12
    %p192 = scmp.lt.s32.totalorder %s12, 3
    %p193 = pnand %p191, %p192
    %p194 = pneg %p193
    // Predicated region
    $region9: #{merge_block.1} parent=5 // pred_check
      _
    $region10: #{merge_block.1} parent=5 // pred_check_branch
      %196 = sbr.rel (%p193) target = $region12
    $region11: #{merge_block.1} parent=5 // pred_region
      %s197 = ssub.s32 %s12, 1
      // Predicated region
      $region13: #{merge_block.1} parent=11 // pred_check
        %p198 = pneg %p71
      $region14: #{merge_block.1} parent=11 // pred_check_branch
        %200 = sbr.rel (%p198) target = $region16
      $region15: #{merge_block.1} parent=11 // pred_region
        _
      $region16: #{merge_block.1} parent=11 // pred_fallthru
        _
      // Predicated region
      $region17: #{merge_block.1} parent=11 // pred_check
        %p201 = pneg %p92
      $region18: #{merge_block.1} parent=11 // pred_check_branch
        %203 = sbr.rel (%p201) target = $region20
      $region19: #{merge_block.1} parent=11 // pred_region
        _
      $region20: #{merge_block.1} parent=11 // pred_fallthru
        _
      // Predicated region
      $region21: #{merge_block.1} parent=11 // pred_check
        %p204 = pneg %p113
      $region22: #{merge_block.1} parent=11 // pred_check_branch
        %206 = sbr.rel (%p204) target = $region24
      $region23: #{merge_block.1} parent=11 // pred_region
        _
      $region24: #{merge_block.1} parent=11 // pred_fallthru
        _
      // Predicated region
      $region25: #{merge_block.1} parent=11 // pred_check
        %p207 = pneg %p134
      $region26: #{merge_block.1} parent=11 // pred_check_branch
        %209 = sbr.rel (%p207) target = $region28
      $region27: #{merge_block.1} parent=11 // pred_region
        _
      $region28: #{merge_block.1} parent=11 // pred_fallthru
        _
      // Predicated region
      $region29: #{merge_block.1} parent=11 // pred_check
        %p210 = pneg %p155
      $region30: #{merge_block.1} parent=11 // pred_check_branch
        %212 = sbr.rel (%p210) target = $region32
      $region31: #{merge_block.1} parent=11 // pred_region
        _
      $region32: #{merge_block.1} parent=11 // pred_fallthru
        _
    $region12: #{merge_block.1} parent=5 // pred_fallthru
      _
    %p213 = scmp.lt.s32.totalorder %s12, 2
    // Predicated region
    $region33: #{merge_block.1} parent=5 // pred_check
      %p214 = pneg %p213
    $region34: #{merge_block.1} parent=5 // pred_check_branch
      %216 = sbr.rel (%p214) target = $region36
    $region35: #{merge_block.1} parent=5 // pred_region
      // Predicated region
      $region37: #{merge_block.1} parent=35 // pred_check
        %p217 = pneg %p44
      $region38: #{merge_block.1} parent=35 // pred_check_branch
        %219 = sbr.rel (%p217) target = $region40
      $region39: #{merge_block.1} parent=35 // pred_region
        %p220 = scmp.lt.s32.totalorder %s19, 1
        %s221 = scalar_select %p220, %s19, 1
        %s222 = smul.addr %s221, 18
        %s223 = smul.addr %s222, 4
        %s224 = scalar_lea.vmem %s0, %s223
      $region40: #{merge_block.1} parent=35 // pred_fallthru
        _
    $region36: #{merge_block.1} parent=5 // pred_fallthru
      _
    %p225 = scmp.le.s32.totalorder 1, %s12
    %p226 = scmp.lt.s32.totalorder %s12, 3
    %p227 = pnand %p225, %p226
    %p228 = pneg %p227
    // Predicated region
    $region41: #{merge_block.1} parent=5 // pred_check
      _
    $region42: #{merge_block.1} parent=5 // pred_check_branch
      %230 = sbr.rel (%p227) target = $region44
    $region43: #{merge_block.1} parent=5 // pred_region
      %s231 = ssub.s32 %s12, 1
      %p232 = scmp.lt.s32.totalorder %s21, 1
      %s233 = scalar_select %p232, %s21, 1
      %s234 = smul.addr %s233, 18
      %s235 = smul.addr %s234, 4
      %s236 = scalar_lea.vmem %s0, %s235
      %p237 = pneg %p50
      %p238 = pneg %p47
      %p239 = pneg %p71
      %p240 = pneg %p68
      %p241 = pneg %p92
      %p242 = pneg %p89
      %p243 = pneg %p113
      %p244 = pneg %p110
      %p245 = pneg %p134
      %p246 = pneg %p131
      %p247 = pneg %p155
      %p248 = pneg %p152
      %p249 = pneg %p183
      %p250 = pneg %p180
      %s251 = smul.u32 16, %s22
      %p252 = scmp.lt.s32.totalorder %s21, 1
      %s253 = scalar_select %p252, %s21, 1
      %p254 = scmp.lt.s32.totalorder %s251, 15
      %s255 = scalar_select %p254, %s251, 15
      %s256 = smul.addr %s253, 16
      %s257 = sadd.s32 %s255, %s256
      %s258 = smul.addr %s257, 8
      %s259 = scalar_lea.vmem %s6, %s258
      %p260 = scmp.lt.s32.totalorder %s21, 1
      %s261 = scalar_select %p260, %s21, 1
      %s262 = smul.addr %s261, 18
      %s263 = smul.addr %s262, 4
      %s264 = scalar_lea.vmem %s0, %s263
      %s265 = smul.u32 16, %s22
      %p266 = scmp.lt.s32.totalorder %s21, 1
      %s267 = scalar_select %p266, %s21, 1
      %p268 = scmp.lt.s32.totalorder %s265, 15
      %s269 = scalar_select %p268, %s265, 15
      %s270 = smul.addr %s267, 16
      %s271 = sadd.s32 %s269, %s270
      %s272 = smul.addr %s271, 8
      %s273 = scalar_lea.vmem %s6, %s272
      %s274 = smul.u32 16, %s22
      %s276 = smul.u32 %s22, 128
      %s277 = sadd.s32 %s276, 16
      %s278 = sshra.s32 %s276, 3
      %s279 = sand.u32 %s276, 7
      %s280 = smul.addr %s278, 4
      %s281 = scalar_lea.vmem %s264, %s280
      %v282 = vld [vmem:[%s281] sm:$0xf]
      %v283 = vld [vmem:[%s281 + $0x4] sm:$0xf]
      %v284 = vld [vmem:[%s281 + $0x8] sm:$0xf]
      %v285 = vld [vmem:[%s281 + $0xc] sm:$0xf]
      %v286 = vld [vmem:[%s281 + $0x10] sm:$0xf]
      %v287 = vld [vmem:[%s281 + $0x14] sm:$0xf]
      %v288 = vld [vmem:[%s281 + $0x18] sm:$0xf]
      %v289 = vld [vmem:[%s281 + $0x1c] sm:$0xf]
      %v290 = vld [vmem:[%s281 + $0x20] sm:$0xf]
      %v291 = vld [vmem:[%s281 + $0x24] sm:$0xf]
      %v292 = vld [vmem:[%s281 + $0x28] sm:$0xf]
      %v293 = vld [vmem:[%s281 + $0x2c] sm:$0xf]
      %v294 = vld [vmem:[%s281 + $0x30] sm:$0xf]
      %v295 = vld [vmem:[%s281 + $0x34] sm:$0xf]
      %v296 = vld [vmem:[%s281 + $0x38] sm:$0xf]
      %v297 = vld [vmem:[%s281 + $0x3c] sm:$0xf]
      %s298 = sshra.s32 %s277, 3
      %s299 = sand.u32 %s277, 7
      %s300 = smul.addr %s298, 4
      %s301 = scalar_lea.vmem %s264, %s300
      %v302 = vld [vmem:[%s301] sm:$0xf]
      %v303 = vld [vmem:[%s301 + $0x4] sm:$0xf]
      %v304 = vld [vmem:[%s301 + $0x8] sm:$0xf]
      %v305 = vld [vmem:[%s301 + $0xc] sm:$0xf]
      %v306 = vld [vmem:[%s301 + $0x10] sm:$0xf]
      %v307 = vld [vmem:[%s301 + $0x14] sm:$0xf]
      %v308 = vld [vmem:[%s301 + $0x18] sm:$0xf]
      %v309 = vld [vmem:[%s301 + $0x1c] sm:$0xf]
      %v310 = vld [vmem:[%s301 + $0x20] sm:$0xf]
      %v311 = vld [vmem:[%s301 + $0x24] sm:$0xf]
      %v312 = vld [vmem:[%s301 + $0x28] sm:$0xf]
      %v313 = vld [vmem:[%s301 + $0x2c] sm:$0xf]
      %v314 = vld [vmem:[%s301 + $0x30] sm:$0xf]
      %v315 = vld [vmem:[%s301 + $0x34] sm:$0xf]
      %v316 = vld [vmem:[%s301 + $0x38] sm:$0xf]
      %v317 = vld [vmem:[%s301 + $0x3c] sm:$0xf]
      %v318 = vld [vmem:[%s1] sm:$0xf]
      %v319 = vld [vmem:[%s1 + $0x4] sm:$0xf]
      %v320 = vld [vmem:[%s1 + $0x8] sm:$0xf]
      %v321 = vld [vmem:[%s2] sm:$0xf]
      %v322 = vld [vmem:[%s2 + $0x4] sm:$0x3]
      %v339 = vunpack.c.l.b16 %v302
      %v340 = vunpack.c.l.b16 %v303
      %v341 = vunpack.c.l.b16 %v304
      %v342 = vunpack.c.l.b16 %v305
      %v343 = vunpack.c.l.b16 %v306
      %v344 = vunpack.c.l.b16 %v307
      %v345 = vunpack.c.l.b16 %v308
      %v346 = vunpack.c.l.b16 %v309
      %v347 = vunpack.c.l.b16 %v310
      %v348 = vunpack.c.l.b16 %v311
      %v349 = vunpack.c.l.b16 %v312
      %v350 = vunpack.c.l.b16 %v313
      %v351 = vunpack.c.l.b16 %v314
      %v352 = vunpack.c.l.b16 %v315
      %v353 = vunpack.c.l.b16 %v316
      %v354 = vunpack.c.l.b16 %v317
      %v355 = vpack.c.b16 %v340, %v339
      %v356 = vpack.c.b16 %v342, %v341
      %v357 = vpack.c.b16 %v344, %v343
      %v358 = vpack.c.b16 %v346, %v345
      %v359 = vpack.c.b16 %v348, %v347
      %v360 = vpack.c.b16 %v350, %v349
      %v361 = vpack.c.b16 %v352, %v351
      %v362 = vpack.c.b16 %v354, %v353
      %v365 = vunpack.c.l.b16 %v321
      %v366 = vunpack.c.l.b16 %v322
      %v367 = vpack.c.b16 %v366, %v365
      %vm368 = vcmask 97280
      %v370 = vsel %vm368, %v355, 0
      %v373 = vsel %vm368, %v356, 0
      %v376 = vsel %vm368, %v357, 0
      %v379 = vsel %vm368, %v358, 0
      %v382 = vsel %vm368, %v359, 0
      %v385 = vsel %vm368, %v360, 0
      %v388 = vsel %vm368, %v361, 0
      %v391 = vsel %vm368, %v362, 0
      %vm393 = vcmask 1045504
      %v395 = vsel %vm393, %v367, 0
      %397 = vmatprep.subr.bf16.mxu0 0
      %398 = vmatpush1.bf16.msra.mxu0 0
      %399 = vmatprep.subr.bf16.mxu0 0
      %400 = vmatpush1.bf16.msra.mxu0 0
      %401 = vmatprep.subr.bf16.mxu0 0
      %402 = vmatpush1.bf16.msra.mxu0 0
      %403 = vmatprep.subr.bf16.mxu0 0
      %404 = vmatpush1.bf16.msra.mxu0 0
      %405 = vmatprep.subr.bf16.mxu0 0
      %406 = vmatpush1.bf16.msra.mxu0 0
      %407 = vmatprep.subr.bf16.mxu0 0
      %408 = vmatpush1.bf16.msra.mxu0 0
      %409 = vmatprep.subr.bf16.mxu0 0
      %410 = vmatpush1.bf16.msra.mxu0 0
      %411 = vmatprep.subr.bf16.mxu0 0
      %412 = vmatpush1.bf16.msra.mxu0 %v395
      %413 = vmatprep.subr.bf16.mxu0 0
      %414 = vmatpush2.bf16.msra.mxu0 0
      %415 = vmatprep.subr.bf16.mxu0 0
      %416 = vmatpush2.bf16.msra.mxu0 0
      %417 = vmatprep.subr.bf16.mxu0 0
      %418 = vmatpush2.bf16.msra.mxu0 0
      %419 = vmatprep.subr.bf16.mxu0 0
      %420 = vmatpush2.bf16.msra.mxu0 0
      %421 = vmatprep.subr.bf16.mxu0 0
      %422 = vmatpush2.bf16.msra.mxu0 0
      %423 = vmatprep.subr.bf16.mxu0 0
      %424 = vmatpush2.bf16.msra.mxu0 0
      %425 = vmatprep.subr.bf16.mxu0 0
      %426 = vmatpush2.bf16.msra.mxu0 0
      %427 = vmatprep.subr.bf16.mxu0 0
      %428 = vmatpush2.bf16.msra.mxu0 0
      %429 = vmatprep.mubr.bf16.mxu0 0
      %430 = vmatmul.mubr.bf16.gmra.mxu0 %v370
      %v431 = vpop.f32.mrf.mxu0
      %v432 = vadd.f32 0.0, %v431
      %v433 = vpop.f32.mrf.mxu0
      %v434 = vpop.f32.mrf.mxu0
      %v435 = vadd.f32 0.0, %v434
      %v436 = vpop.f32.mrf.mxu0
      %437 = vmatprep.mubr.bf16.mxu0 0
      %438 = vmatmul.mubr.bf16.gmra.mxu0 %v373
      %v439 = vpop.f32.mrf.mxu0
      %v440 = vadd.f32 0.0, %v439
      %v441 = vpop.f32.mrf.mxu0
      %v442 = vpop.f32.mrf.mxu0
      %v443 = vadd.f32 0.0, %v442
      %v444 = vpop.f32.mrf.mxu0
      %445 = vmatprep.mubr.bf16.mxu0 0
      %446 = vmatmul.mubr.bf16.gmra.mxu0 %v376
      %v447 = vpop.f32.mrf.mxu0
      %v448 = vadd.f32 0.0, %v447
      %v449 = vpop.f32.mrf.mxu0
      %v450 = vpop.f32.mrf.mxu0
      %v451 = vadd.f32 0.0, %v450
      %v452 = vpop.f32.mrf.mxu0
      %453 = vmatprep.mubr.bf16.mxu0 0
      %454 = vmatmul.mubr.bf16.gmra.mxu0 %v379
      %v455 = vpop.f32.mrf.mxu0
      %v456 = vadd.f32 0.0, %v455
      %v457 = vpop.f32.mrf.mxu0
      %v458 = vpop.f32.mrf.mxu0
      %v459 = vadd.f32 0.0, %v458
      %v460 = vpop.f32.mrf.mxu0
      %461 = vmatprep.mubr.bf16.mxu0 0
      %462 = vmatmul.mubr.bf16.gmra.mxu0 %v382
      %v463 = vpop.f32.mrf.mxu0
      %v464 = vadd.f32 0.0, %v463
      %v465 = vpop.f32.mrf.mxu0
      %v466 = vpop.f32.mrf.mxu0
      %v467 = vadd.f32 0.0, %v466
      %v468 = vpop.f32.mrf.mxu0
      %469 = vmatprep.mubr.bf16.mxu0 0
      %470 = vmatmul.mubr.bf16.gmra.mxu0 %v385
      %v471 = vpop.f32.mrf.mxu0
      %v472 = vadd.f32 0.0, %v471
      %v473 = vpop.f32.mrf.mxu0
      %v474 = vpop.f32.mrf.mxu0
      %v475 = vadd.f32 0.0, %v474
      %v476 = vpop.f32.mrf.mxu0
      %477 = vmatprep.mubr.bf16.mxu0 0
      %478 = vmatmul.mubr.bf16.gmra.mxu0 %v388
      %v479 = vpop.f32.mrf.mxu0
      %v480 = vadd.f32 0.0, %v479
      %v481 = vpop.f32.mrf.mxu0
      %v482 = vpop.f32.mrf.mxu0
      %v483 = vadd.f32 0.0, %v482
      %v484 = vpop.f32.mrf.mxu0
      %485 = vmatprep.mubr.bf16.mxu0 0
      %486 = vmatmul.mubr.bf16.gmra.mxu0 %v391
      %v487 = vpop.f32.mrf.mxu0
      %v488 = vadd.f32 0.0, %v487
      %v489 = vpop.f32.mrf.mxu0
      %v490 = vpop.f32.mrf.mxu0
      %v491 = vadd.f32 0.0, %v490
      %v492 = vpop.f32.mrf.mxu0
      %493 = vdwg.mxu0
      %v510 = vunpack.c.l.b16 %v282
      %v511 = vunpack.c.l.b16 %v283
      %v512 = vunpack.c.l.b16 %v284
      %v513 = vunpack.c.l.b16 %v285
      %v514 = vunpack.c.l.b16 %v286
      %v515 = vunpack.c.l.b16 %v287
      %v516 = vunpack.c.l.b16 %v288
      %v517 = vunpack.c.l.b16 %v289
      %v518 = vunpack.c.l.b16 %v290
      %v519 = vunpack.c.l.b16 %v291
      %v520 = vunpack.c.l.b16 %v292
      %v521 = vunpack.c.l.b16 %v293
      %v522 = vunpack.c.l.b16 %v294
      %v523 = vunpack.c.l.b16 %v295
      %v524 = vunpack.c.l.b16 %v296
      %v525 = vunpack.c.l.b16 %v297
      %v526 = vpack.c.b16 %v511, %v510
      %v527 = vpack.c.b16 %v513, %v512
      %v528 = vpack.c.b16 %v515, %v514
      %v529 = vpack.c.b16 %v517, %v516
      %v530 = vpack.c.b16 %v519, %v518
      %v531 = vpack.c.b16 %v521, %v520
      %v532 = vpack.c.b16 %v523, %v522
      %v533 = vpack.c.b16 %v525, %v524
      %v537 = vunpack.c.l.b16 %v318
      %v538 = vunpack.c.l.b16 %v319
      %v539 = vunpack.c.l.b16 %v320
      %v540 = vpack.c.b16 %v538, %v537
      %v541 = vpack.c.b16 %v539, %v539
      %vm543 = vcmask 195584
      %v545 = vsel %vm543, %v526, 0
      %v548 = vsel %vm543, %v527, 0
      %v551 = vsel %vm543, %v528, 0
      %v554 = vsel %vm543, %v529, 0
      %v557 = vsel %vm543, %v530, 0
      %v560 = vsel %vm543, %v531, 0
      %v563 = vsel %vm543, %v532, 0
      %v566 = vsel %vm543, %v533, 0
      %vm568 = vcmask 1043456
      %v570 = vsel %vm568, %v541, 0
      %572 = vmatprep.subr.bf16.mxu0 0
      %573 = vmatpush1.bf16.msra.mxu0 0
      %574 = vmatprep.subr.bf16.mxu0 0
      %575 = vmatpush1.bf16.msra.mxu0 0
      %576 = vmatprep.subr.bf16.mxu0 0
      %577 = vmatpush1.bf16.msra.mxu0 0
      %578 = vmatprep.subr.bf16.mxu0 0
      %579 = vmatpush1.bf16.msra.mxu0 0
      %580 = vmatprep.subr.bf16.mxu0 0
      %581 = vmatpush1.bf16.msra.mxu0 0
      %582 = vmatprep.subr.bf16.mxu0 0
      %583 = vmatpush1.bf16.msra.mxu0 0
      %584 = vmatprep.subr.bf16.mxu0 0
      %585 = vmatpush1.bf16.msra.mxu0 %v570
      %586 = vmatprep.subr.bf16.mxu0 0
      %587 = vmatpush1.bf16.msra.mxu0 %v540
      %588 = vmatprep.subr.bf16.mxu0 0
      %589 = vmatpush2.bf16.msra.mxu0 0
      %590 = vmatprep.subr.bf16.mxu0 0
      %591 = vmatpush2.bf16.msra.mxu0 0
      %592 = vmatprep.subr.bf16.mxu0 0
      %593 = vmatpush2.bf16.msra.mxu0 0
      %594 = vmatprep.subr.bf16.mxu0 0
      %595 = vmatpush2.bf16.msra.mxu0 0
      %596 = vmatprep.subr.bf16.mxu0 0
      %597 = vmatpush2.bf16.msra.mxu0 0
      %598 = vmatprep.subr.bf16.mxu0 0
      %599 = vmatpush2.bf16.msra.mxu0 0
      %600 = vmatprep.subr.bf16.mxu0 0
      %601 = vmatpush2.bf16.msra.mxu0 0
      %602 = vmatprep.subr.bf16.mxu0 0
      %603 = vmatpush2.bf16.msra.mxu0 0
      %604 = vmatprep.mubr.bf16.mxu0 0
      %605 = vmatmul.mubr.bf16.gmra.mxu0 %v545
      %v606 = vpop.f32.mrf.mxu0
      %v607 = vadd.f32 %v432, %v606
      %v608 = vpop.f32.mrf.mxu0
      %v609 = vpop.f32.mrf.mxu0
      %v610 = vadd.f32 %v435, %v609
      %v611 = vpop.f32.mrf.mxu0
      %612 = vmatprep.mubr.bf16.mxu0 0
      %613 = vmatmul.mubr.bf16.gmra.mxu0 %v548
      %v614 = vpop.f32.mrf.mxu0
      %v615 = vadd.f32 %v440, %v614
      %v616 = vpop.f32.mrf.mxu0
      %v617 = vpop.f32.mrf.mxu0
      %v618 = vadd.f32 %v443, %v617
      %v619 = vpop.f32.mrf.mxu0
      %620 = vmatprep.mubr.bf16.mxu0 0
      %621 = vmatmul.mubr.bf16.gmra.mxu0 %v551
      %v622 = vpop.f32.mrf.mxu0
      %v623 = vadd.f32 %v448, %v622
      %v624 = vpop.f32.mrf.mxu0
      %v625 = vpop.f32.mrf.mxu0
      %v626 = vadd.f32 %v451, %v625
      %v627 = vpop.f32.mrf.mxu0
      %628 = vmatprep.mubr.bf16.mxu0 0
      %629 = vmatmul.mubr.bf16.gmra.mxu0 %v554
      %v630 = vpop.f32.mrf.mxu0
      %v631 = vadd.f32 %v456, %v630
      %v632 = vpop.f32.mrf.mxu0
      %v633 = vpop.f32.mrf.mxu0
      %v634 = vadd.f32 %v459, %v633
      %v635 = vpop.f32.mrf.mxu0
      %636 = vmatprep.mubr.bf16.mxu0 0
      %637 = vmatmul.mubr.bf16.gmra.mxu0 %v557
      %v638 = vpop.f32.mrf.mxu0
      %v639 = vadd.f32 %v464, %v638
      %v640 = vpop.f32.mrf.mxu0
      %v641 = vpop.f32.mrf.mxu0
      %v642 = vadd.f32 %v467, %v641
      %v643 = vpop.f32.mrf.mxu0
      %644 = vmatprep.mubr.bf16.mxu0 0
      %645 = vmatmul.mubr.bf16.gmra.mxu0 %v560
      %v646 = vpop.f32.mrf.mxu0
      %v647 = vadd.f32 %v472, %v646
      %v648 = vpop.f32.mrf.mxu0
      %v649 = vpop.f32.mrf.mxu0
      %v650 = vadd.f32 %v475, %v649
      %v651 = vpop.f32.mrf.mxu0
      %652 = vmatprep.mubr.bf16.mxu0 0
      %653 = vmatmul.mubr.bf16.gmra.mxu0 %v563
      %v654 = vpop.f32.mrf.mxu0
      %v655 = vadd.f32 %v480, %v654
      %v656 = vpop.f32.mrf.mxu0
      %v657 = vpop.f32.mrf.mxu0
      %v658 = vadd.f32 %v483, %v657
      %v659 = vpop.f32.mrf.mxu0
      %660 = vmatprep.mubr.bf16.mxu0 0
      %661 = vmatmul.mubr.bf16.gmra.mxu0 %v566
      %v662 = vpop.f32.mrf.mxu0
      %v663 = vadd.f32 %v488, %v662
      %v664 = vpop.f32.mrf.mxu0
      %v665 = vpop.f32.mrf.mxu0
      %v666 = vadd.f32 %v491, %v665
      %v667 = vpop.f32.mrf.mxu0
      %668 = vdwg.mxu0
      %v669 = vld [vmem:[%s3] sm:$0x1]
      %v671 = vlaneseq
      %v672 = vshrl.u32 %v671, 7
      %v673 = vsub.s32 0, %v672
      %v674 = vrot.slane %v669, %v673
      %v676 = vadd.f32 %v607, %v674
      %v677 = vadd.f32 %v610, %v674
      %v678 = vadd.f32 %v615, %v674
      %v679 = vadd.f32 %v618, %v674
      %v680 = vadd.f32 %v623, %v674
      %v681 = vadd.f32 %v626, %v674
      %v682 = vadd.f32 %v631, %v674
      %v683 = vadd.f32 %v634, %v674
      %v684 = vadd.f32 %v639, %v674
      %v685 = vadd.f32 %v642, %v674
      %v686 = vadd.f32 %v647, %v674
      %v687 = vadd.f32 %v650, %v674
      %v688 = vadd.f32 %v655, %v674
      %v689 = vadd.f32 %v658, %v674
      %v690 = vadd.f32 %v663, %v674
      %v691 = vadd.f32 %v666, %v674
      %v692 = vlaneseq
      %v693 = vand.u32 %v692, 127
      %vm694 = vcmp.lt.s32.totalorder %v693, 8
      %v695 = vsel %vm694, 1, 0
      %v696 = vcvt.s32.f32 %v695
      %v697 = vmul.f32 %v676, %v696
      %v698 = vmul.f32 %v677, %v696
      %v699 = vmul.f32 %v678, %v696
      %v700 = vmul.f32 %v679, %v696
      %v701 = vmul.f32 %v680, %v696
      %v702 = vmul.f32 %v681, %v696
      %v703 = vmul.f32 %v682, %v696
      %v704 = vmul.f32 %v683, %v696
      %v705 = vmul.f32 %v684, %v696
      %v706 = vmul.f32 %v685, %v696
      %v707 = vmul.f32 %v686, %v696
      %v708 = vmul.f32 %v687, %v696
      %v709 = vmul.f32 %v688, %v696
      %v710 = vmul.f32 %v689, %v696
      %v711 = vmul.f32 %v690, %v696
      %v712 = vmul.f32 %v691, %v696
      %713 = vadd.xlane.f32.xlu0 %v697
      %v714 = vpop.xlane.xlu0 %713
      %715 = vadd.xlane.f32.xlu0 %v698
      %v716 = vpop.xlane.xlu0 %715
      %717 = vadd.xlane.f32.xlu0 %v699
      %v718 = vpop.xlane.xlu0 %717
      %719 = vadd.xlane.f32.xlu0 %v700
      %v720 = vpop.xlane.xlu0 %719
      %721 = vadd.xlane.f32.xlu0 %v701
      %v722 = vpop.xlane.xlu0 %721
      %723 = vadd.xlane.f32.xlu0 %v702
      %v724 = vpop.xlane.xlu0 %723
      %725 = vadd.xlane.f32.xlu0 %v703
      %v726 = vpop.xlane.xlu0 %725
      %727 = vadd.xlane.f32.xlu0 %v704
      %v728 = vpop.xlane.xlu0 %727
      %729 = vadd.xlane.f32.xlu0 %v705
      %v730 = vpop.xlane.xlu0 %729
      %731 = vadd.xlane.f32.xlu0 %v706
      %v732 = vpop.xlane.xlu0 %731
      %733 = vadd.xlane.f32.xlu0 %v707
      %v734 = vpop.xlane.xlu0 %733
      %735 = vadd.xlane.f32.xlu0 %v708
      %v736 = vpop.xlane.xlu0 %735
      %737 = vadd.xlane.f32.xlu0 %v709
      %v738 = vpop.xlane.xlu0 %737
      %739 = vadd.xlane.f32.xlu0 %v710
      %v740 = vpop.xlane.xlu0 %739
      %741 = vadd.xlane.f32.xlu0 %v711
      %v742 = vpop.xlane.xlu0 %741
      %743 = vadd.xlane.f32.xlu0 %v712
      %v744 = vpop.xlane.xlu0 %743
      %v745 = vmul.f32 %v714, 0.125
      %v746 = vmul.f32 %v716, 0.125
      %v747 = vmul.f32 %v718, 0.125
      %v748 = vmul.f32 %v720, 0.125
      %v749 = vmul.f32 %v722, 0.125
      %v750 = vmul.f32 %v724, 0.125
      %v751 = vmul.f32 %v726, 0.125
      %v752 = vmul.f32 %v728, 0.125
      %v753 = vmul.f32 %v730, 0.125
      %v754 = vmul.f32 %v732, 0.125
      %v755 = vmul.f32 %v734, 0.125
      %v756 = vmul.f32 %v736, 0.125
      %v757 = vmul.f32 %v738, 0.125
      %v758 = vmul.f32 %v740, 0.125
      %v759 = vmul.f32 %v742, 0.125
      %v760 = vmul.f32 %v744, 0.125
      %v761 = vsub.f32 %v676, %v745
      %v762 = vsub.f32 %v677, %v746
      %v763 = vsub.f32 %v678, %v747
      %v764 = vsub.f32 %v679, %v748
      %v765 = vsub.f32 %v680, %v749
      %v766 = vsub.f32 %v681, %v750
      %v767 = vsub.f32 %v682, %v751
      %v768 = vsub.f32 %v683, %v752
      %v769 = vsub.f32 %v684, %v753
      %v770 = vsub.f32 %v685, %v754
      %v771 = vsub.f32 %v686, %v755
      %v772 = vsub.f32 %v687, %v756
      %v773 = vsub.f32 %v688, %v757
      %v774 = vsub.f32 %v689, %v758
      %v775 = vsub.f32 %v690, %v759
      %v776 = vsub.f32 %v691, %v760
      %v777 = vmul.f32 %v761, %v696
      %v778 = vmul.f32 %v762, %v696
      %v779 = vmul.f32 %v763, %v696
      %v780 = vmul.f32 %v764, %v696
      %v781 = vmul.f32 %v765, %v696
      %v782 = vmul.f32 %v766, %v696
      %v783 = vmul.f32 %v767, %v696
      %v784 = vmul.f32 %v768, %v696
      %v785 = vmul.f32 %v769, %v696
      %v786 = vmul.f32 %v770, %v696
      %v787 = vmul.f32 %v771, %v696
      %v788 = vmul.f32 %v772, %v696
      %v789 = vmul.f32 %v773, %v696
      %v790 = vmul.f32 %v774, %v696
      %v791 = vmul.f32 %v775, %v696
      %v792 = vmul.f32 %v776, %v696
      %v793 = vmul.f32 %v777, %v777
      %v794 = vmul.f32 %v778, %v778
      %v795 = vmul.f32 %v779, %v779
      %v796 = vmul.f32 %v780, %v780
      %v797 = vmul.f32 %v781, %v781
      %v798 = vmul.f32 %v782, %v782
      %v799 = vmul.f32 %v783, %v783
      %v800 = vmul.f32 %v784, %v784
      %v801 = vmul.f32 %v785, %v785
      %v802 = vmul.f32 %v786, %v786
      %v803 = vmul.f32 %v787, %v787
      %v804 = vmul.f32 %v788, %v788
      %v805 = vmul.f32 %v789, %v789
      %v806 = vmul.f32 %v790, %v790
      %v807 = vmul.f32 %v791, %v791
      %v808 = vmul.f32 %v792, %v792
      %809 = vadd.xlane.f32.xlu0 %v793
      %v810 = vpop.xlane.xlu0 %809
      %811 = vadd.xlane.f32.xlu0 %v794
      %v812 = vpop.xlane.xlu0 %811
      %813 = vadd.xlane.f32.xlu0 %v795
      %v814 = vpop.xlane.xlu0 %813
      %815 = vadd.xlane.f32.xlu0 %v796
      %v816 = vpop.xlane.xlu0 %815
      %817 = vadd.xlane.f32.xlu0 %v797
      %v818 = vpop.xlane.xlu0 %817
      %819 = vadd.xlane.f32.xlu0 %v798
      %v820 = vpop.xlane.xlu0 %819
      %821 = vadd.xlane.f32.xlu0 %v799
      %v822 = vpop.xlane.xlu0 %821
      %823 = vadd.xlane.f32.xlu0 %v800
      %v824 = vpop.xlane.xlu0 %823
      %825 = vadd.xlane.f32.xlu0 %v801
      %v826 = vpop.xlane.xlu0 %825
      %827 = vadd.xlane.f32.xlu0 %v802
      %v828 = vpop.xlane.xlu0 %827
      %829 = vadd.xlane.f32.xlu0 %v803
      %v830 = vpop.xlane.xlu0 %829
      %831 = vadd.xlane.f32.xlu0 %v804
      %v832 = vpop.xlane.xlu0 %831
      %833 = vadd.xlane.f32.xlu0 %v805
      %v834 = vpop.xlane.xlu0 %833
      %835 = vadd.xlane.f32.xlu0 %v806
      %v836 = vpop.xlane.xlu0 %835
      %837 = vadd.xlane.f32.xlu0 %v807
      %v838 = vpop.xlane.xlu0 %837
      %839 = vadd.xlane.f32.xlu0 %v808
      %v840 = vpop.xlane.xlu0 %839
      %v841 = vmul.f32 %v810, 0.125
      %v842 = vmul.f32 %v812, 0.125
      %v843 = vmul.f32 %v814, 0.125
      %v844 = vmul.f32 %v816, 0.125
      %v845 = vmul.f32 %v818, 0.125
      %v846 = vmul.f32 %v820, 0.125
      %v847 = vmul.f32 %v822, 0.125
      %v848 = vmul.f32 %v824, 0.125
      %v849 = vmul.f32 %v826, 0.125
      %v850 = vmul.f32 %v828, 0.125
      %v851 = vmul.f32 %v830, 0.125
      %v852 = vmul.f32 %v832, 0.125
      %v853 = vmul.f32 %v834, 0.125
      %v854 = vmul.f32 %v836, 0.125
      %v855 = vmul.f32 %v838, 0.125
      %v856 = vmul.f32 %v840, 0.125
      %v857 = vadd.f32 %v841, 1e-05
      %v858 = vadd.f32 %v842, 1e-05
      %v859 = vadd.f32 %v843, 1e-05
      %v860 = vadd.f32 %v844, 1e-05
      %v861 = vadd.f32 %v845, 1e-05
      %v862 = vadd.f32 %v846, 1e-05
      %v863 = vadd.f32 %v847, 1e-05
      %v864 = vadd.f32 %v848, 1e-05
      %v865 = vadd.f32 %v849, 1e-05
      %v866 = vadd.f32 %v850, 1e-05
      %v867 = vadd.f32 %v851, 1e-05
      %v868 = vadd.f32 %v852, 1e-05
      %v869 = vadd.f32 %v853, 1e-05
      %v870 = vadd.f32 %v854, 1e-05
      %v871 = vadd.f32 %v855, 1e-05
      %v872 = vadd.f32 %v856, 1e-05
      %v873 = vrsqrt.pop %v857
      %v874 = vrsqrt.pop %v858
      %v875 = vrsqrt.pop %v859
      %v876 = vrsqrt.pop %v860
      %v877 = vrsqrt.pop %v861
      %v878 = vrsqrt.pop %v862
      %v879 = vrsqrt.pop %v863
      %v880 = vrsqrt.pop %v864
      %v881 = vrsqrt.pop %v865
      %v882 = vrsqrt.pop %v866
      %v883 = vrsqrt.pop %v867
      %v884 = vrsqrt.pop %v868
      %v885 = vrsqrt.pop %v869
      %v886 = vrsqrt.pop %v870
      %v887 = vrsqrt.pop %v871
      %v888 = vrsqrt.pop %v872
      %v889 = vmul.f32 %v777, %v873
      %v890 = vmul.f32 %v778, %v874
      %v891 = vmul.f32 %v779, %v875
      %v892 = vmul.f32 %v780, %v876
      %v893 = vmul.f32 %v781, %v877
      %v894 = vmul.f32 %v782, %v878
      %v895 = vmul.f32 %v783, %v879
      %v896 = vmul.f32 %v784, %v880
      %v897 = vmul.f32 %v785, %v881
      %v898 = vmul.f32 %v786, %v882
      %v899 = vmul.f32 %v787, %v883
      %v900 = vmul.f32 %v788, %v884
      %v901 = vmul.f32 %v789, %v885
      %v902 = vmul.f32 %v790, %v886
      %v903 = vmul.f32 %v791, %v887
      %v904 = vmul.f32 %v792, %v888
      %v905 = vld [vmem:[%s4] sm:$0x1]
      %v907 = vlaneseq
      %v908 = vshrl.u32 %v907, 7
      %v909 = vsub.s32 0, %v908
      %v910 = vrot.slane %v905, %v909
      %v912 = vmul.f32 %v889, %v910
      %v913 = vmul.f32 %v890, %v910
      %v914 = vmul.f32 %v891, %v910
      %v915 = vmul.f32 %v892, %v910
      %v916 = vmul.f32 %v893, %v910
      %v917 = vmul.f32 %v894, %v910
      %v918 = vmul.f32 %v895, %v910
      %v919 = vmul.f32 %v896, %v910
      %v920 = vmul.f32 %v897, %v910
      %v921 = vmul.f32 %v898, %v910
      %v922 = vmul.f32 %v899, %v910
      %v923 = vmul.f32 %v900, %v910
      %v924 = vmul.f32 %v901, %v910
      %v925 = vmul.f32 %v902, %v910
      %v926 = vmul.f32 %v903, %v910
      %v927 = vmul.f32 %v904, %v910
      %v928 = vld [vmem:[%s5] sm:$0x1]
      %v930 = vlaneseq
      %v931 = vshrl.u32 %v930, 7
      %v932 = vsub.s32 0, %v931
      %v933 = vrot.slane %v928, %v932
      %v935 = vadd.f32 %v912, %v933
      %v936 = vadd.f32 %v913, %v933
      %v937 = vadd.f32 %v914, %v933
      %v938 = vadd.f32 %v915, %v933
      %v939 = vadd.f32 %v916, %v933
      %v940 = vadd.f32 %v917, %v933
      %v941 = vadd.f32 %v918, %v933
      %v942 = vadd.f32 %v919, %v933
      %v943 = vadd.f32 %v920, %v933
      %v944 = vadd.f32 %v921, %v933
      %v945 = vadd.f32 %v922, %v933
      %v946 = vadd.f32 %v923, %v933
      %v947 = vadd.f32 %v924, %v933
      %v948 = vadd.f32 %v925, %v933
      %v949 = vadd.f32 %v926, %v933
      %v950 = vadd.f32 %v927, %v933
      %951 = vst [vmem:[%s273] sm:$0xff] %v935
      %952 = vst [vmem:[%s273 + $0x8] sm:$0xff] %v936
      %953 = vst [vmem:[%s273 + $0x10] sm:$0xff] %v937
      %954 = vst [vmem:[%s273 + $0x18] sm:$0xff] %v938
      %955 = vst [vmem:[%s273 + $0x20] sm:$0xff] %v939
      %956 = vst [vmem:[%s273 + $0x28] sm:$0xff] %v940
      %957 = vst [vmem:[%s273 + $0x30] sm:$0xff] %v941
      %958 = vst [vmem:[%s273 + $0x38] sm:$0xff] %v942
      %959 = vst [vmem:[%s273 + $0x40] sm:$0xff] %v943
      %960 = vst [vmem:[%s273 + $0x48] sm:$0xff] %v944
      %961 = vst [vmem:[%s273 + $0x50] sm:$0xff] %v945
      %962 = vst [vmem:[%s273 + $0x58] sm:$0xff] %v946
      %963 = vst [vmem:[%s273 + $0x60] sm:$0xff] %v947
      %964 = vst [vmem:[%s273 + $0x68] sm:$0xff] %v948
      %965 = vst [vmem:[%s273 + $0x70] sm:$0xff] %v949
      %966 = vst [vmem:[%s273 + $0x78] sm:$0xff] %v950
      %s967 = smul.u32 16, %s22
      %p968 = scmp.lt.s32.totalorder %s21, 1
      %s969 = scalar_select %p968, %s21, 1
      %p970 = scmp.lt.s32.totalorder %s967, 15
      %s971 = scalar_select %p970, %s967, 15
      %s972 = smul.addr %s969, 16
      %s973 = sadd.s32 %s971, %s972
      %s974 = smul.addr %s973, 8
      %s975 = scalar_lea.vmem %s6, %s974
      // Predicated region
      $region45: #{merge_block.1} parent=43 // pred_check
        %p976 = pneg %p180
      $region46: #{merge_block.1} parent=43 // pred_check_branch
        %978 = sbr.rel (%p976) target = $region48
      $region47: #{merge_block.1} parent=43 // pred_region
        %s979 = smul.u32 16, %s22
      $region48: #{merge_block.1} parent=43 // pred_fallthru
        _
    $region44: #{merge_block.1} parent=5 // pred_fallthru
      _
    %p980 = scmp.le.s32.totalorder 2, %s12
    // Predicated region
    $region49: #{merge_block.1} parent=5 // pred_check
      %p981 = pneg %p980
    $region50: #{merge_block.1} parent=5 // pred_check_branch
      %983 = sbr.rel (%p981) target = $region52
    $region51: #{merge_block.1} parent=5 // pred_region
      %s984 = ssub.s32 %s12, 2
      // Predicated region
      $region53: #{merge_block.1} parent=51 // pred_check
        %p985 = pneg %p186
      $region54: #{merge_block.1} parent=51 // pred_check_branch
        %987 = sbr.rel (%p985) target = $region56
      $region55: #{merge_block.1} parent=51 // pred_region
        %s988 = smul.u32 16, %s24
        %p989 = scmp.lt.s32.totalorder %s23, 1
        %s990 = scalar_select %p989, %s23, 1
        %p991 = scmp.lt.s32.totalorder %s988, 15
        %s992 = scalar_select %p991, %s988, 15
        %s993 = smul.addr %s990, 16
        %s994 = sadd.s32 %s992, %s993
        %s995 = smul.addr %s994, 8
        %s996 = scalar_lea.vmem %s6, %s995
      $region56: #{merge_block.1} parent=51 // pred_fallthru
        _
    $region52: #{merge_block.1} parent=5 // pred_fallthru
      _
  $region6: #{merge_block.1} parent=0 // loop_footer
    %s16 = sadd.s32 1, %s12
  $region7: #{merge_block.1} parent=0 // loop_footer_branch
    %11 = sbr.rel target = $region3
  $region8: #{merge_block.1} parent=0 // loop_exit
    _

</llo_original>
